<compile_context>
chip_gen: v7x
topology: tpu7x:2x2x1
jax: 0.10.0
libtpu: 0.0.40
codegen_flags: <defaults>
</compile_context>

<pallas_src>
import jax
import jax.numpy as jnp
from jax.experimental import pallas as pl
from jax.experimental.pallas import tpu as pltpu

CLIP = 10.0
EPS = 1e-8

_LANE = 128
_SUBLANE = 8
# Per-tile f32 budget for the x / y blocks (each double-buffered by Pallas).
_TILE_BYTES = 2 * 1024 * 1024

_SMEM_SPEC = pl.BlockSpec(memory_space=pltpu.MemorySpace.SMEM)
_COMPILER_PARAMS = pltpu.CompilerParams(
    dimension_semantics=("parallel",),
    vmem_limit_bytes=32 * 1024 * 1024,
)


def _round_up(x, mult):
    return (x + mult - 1) // mult * mult


def _choose_tile_d(m, dim_pad):
    """Feature-tile width (multiple of 128) so an (m, TILE_D) f32 tile <= budget."""
    cols = max(_LANE, (_TILE_BYTES // (m * 4)) // _LANE * _LANE)
    cols = min(cols, dim_pad)
    while dim_pad % cols:          # keep the grid exact (dim_pad is a multiple of 128)
        cols -= _LANE
    return cols


def _choose_tile_b(batch, dim_pad):
    """Batch-tile height (multiple of 8) so a (TILE_B, dim_pad) f32 tile <= budget."""
    rows = max(_SUBLANE, (_TILE_BYTES // (dim_pad * 4)) // _SUBLANE * _SUBLANE)
    if rows >= batch:
        return batch               # single block covering the full batch
    return rows


def _update_normalize_kernel(w_ref, x_ref, mean_ref, var_ref,
                             y_ref, new_mean_ref, new_var_ref, new_std_ref):
    """Fused running-stat update (Chan merge) + normalize + clip, one feature tile."""
    x = x_ref[...].astype(jnp.float32)                  # (m, tile_d)
    m = x.shape[0]                                      # static

    # torch.var_mean(x, dim=0, unbiased=False)
    if m >= 256:
        # Batch reduction on the MXU: skinny (1, m) @ (m, tile_d) matmuls.
        ones = jnp.ones((1, m), jnp.float32)
        inv_m = jnp.float32(1.0 / m)
        mean_x = jnp.dot(ones, x, preferred_element_type=jnp.float32) * inv_m
        centered = x - mean_x
        var_x = jnp.dot(ones, centered * centered,
                        preferred_element_type=jnp.float32) * inv_m
    else:
        mean_x = jnp.mean(x, axis=0, keepdims=True)     # (1, tile_d)
        var_x = jnp.mean((x - mean_x) ** 2, axis=0, keepdims=True)

    w = w_ref[0]                                        # f32 scalar = n / (n + m)
    old_mean = mean_ref[...]                            # (1, tile_d)
    old_var = var_ref[...]
    new_var = (w * old_var + (1.0 - w) * var_x
               + w * (1.0 - w) * (mean_x - old_mean) ** 2)
    new_mean = w * old_mean + (1.0 - w) * mean_x
    new_std = jnp.sqrt(new_var)

    new_mean_ref[...] = new_mean
    new_var_ref[...] = new_var
    new_std_ref[...] = new_std

    # After update n becomes n + m > 0, so normalization always applies in training.
    # One exact divide per feature, then broadcast multiply over the batch.
    inv_std = 1.0 / (new_std + EPS)                     # (1, tile_d)
    y = (x - new_mean) * inv_std
    y_ref[...] = jnp.clip(y, -CLIP, CLIP).astype(y_ref.dtype)


def _normalize_kernel(x_ref, mean_ref, std_ref, y_ref):
    """Eval path (n > 0): y = clip((x - mean) * 1/(std + eps), -clip, clip)."""
    x = x_ref[...].astype(jnp.float32)
    inv_std = 1.0 / (std_ref[...] + EPS)                # (1, dim_pad)
    y = (x - mean_ref[...]) * inv_std
    y_ref[...] = jnp.clip(y, -CLIP, CLIP).astype(y_ref.dtype)


@jax.jit
def _forward_train_call(w_arr, x, mean, var):
    m, dim_pad = x.shape
    tile_d = _choose_tile_d(m, dim_pad)
    x_spec = pl.BlockSpec((m, tile_d), lambda j: (0, j))
    stat_spec = pl.BlockSpec((1, tile_d), lambda j: (0, j))
    out_shapes = (
        jax.ShapeDtypeStruct((m, dim_pad), x.dtype),        # y
        jax.ShapeDtypeStruct((1, dim_pad), jnp.float32),    # new mean
        jax.ShapeDtypeStruct((1, dim_pad), jnp.float32),    # new var
        jax.ShapeDtypeStruct((1, dim_pad), jnp.float32),    # new std
    )
    # TODO(synk): for replay-buffer-sized batches where an (m, TILE_D) f32 tile no
    # longer fits VMEM, restructure as accumulate-then-finalize over an "arbitrary"
    # batch-grid axis (Chan partial stats in scratch + pl.when).
    return pl.pallas_call(
        _update_normalize_kernel,
        out_shape=out_shapes,
        grid=(dim_pad // tile_d,),
        in_specs=[_SMEM_SPEC, x_spec, stat_spec, stat_spec],
        out_specs=(x_spec, stat_spec, stat_spec, stat_spec),
        compiler_params=_COMPILER_PARAMS,
    )(w_arr, x, mean, var)


@jax.jit
def _forward_eval_call(x, mean, std):
    batch, dim_pad = x.shape
    tile_b = _choose_tile_b(batch, dim_pad)
    x_spec = pl.BlockSpec((tile_b, dim_pad), lambda i: (i, 0))
    stat_spec = pl.BlockSpec((1, dim_pad), lambda i: (0, 0))
    return pl.pallas_call(
        _normalize_kernel,
        out_shape=jax.ShapeDtypeStruct((batch, dim_pad), x.dtype),
        grid=(pl.cdiv(batch, tile_b),),
        in_specs=[x_spec, stat_spec, stat_spec],
        out_specs=x_spec,
        compiler_params=_COMPILER_PARAMS,
    )(x, mean, std)


class RunningNormPallas:
    """JAX/Pallas port of RunningNorm(dim, demean=True, destd=True, clip=10.0)."""

    def __init__(self, dim):
        self.dim = dim
        self.dim_pad = _round_up(dim, _LANE)
        # n tracked host-side as a Python int (no int32 overflow).
        self.n = 0
        # Buffers kept lane-padded internally; exposed sliced to `dim`.
        self._mean = jnp.zeros((1, self.dim_pad), jnp.float32)
        self._var = jnp.ones((1, self.dim_pad), jnp.float32)
        self._std = jnp.ones((1, self.dim_pad), jnp.float32)

    @property
    def mean(self):
        return self._mean[:, :self.dim]

    @property
    def var(self):
        return self._var[:, :self.dim]

    @property
    def std(self):
        return self._std[:, :self.dim]

    def _pad(self, x):
        if self.dim_pad == self.dim:
            return x
        return jnp.pad(x, ((0, 0), (0, self.dim_pad - self.dim)))

    def forward(self, x, training=True):
        m = x.shape[0]
        if training:
            w = float(self.n) / float(self.n + m)       # merge weight, host-side
            w_arr = jnp.array([w], dtype=jnp.float32)
            y_p, self._mean, self._var, self._std = _forward_train_call(
                w_arr, self._pad(x), self._mean, self._var)
            self.n += m
            return y_p[:, :self.dim]
        if self.n > 0:
            y_p = _forward_eval_call(self._pad(x), self._mean, self._std)
            return y_p[:, :self.dim]
        return x


def _reference_forward(x, n, mean, var, training=True):
    """Pure-JAX mirror of the PyTorch forward, for verification."""
    if training:
        m = x.shape[0]
        mean_x = jnp.mean(x, axis=0, keepdims=True)
        var_x = jnp.mean((x - mean_x) ** 2, axis=0, keepdims=True)
        w = jnp.float32(n) / jnp.float32(n + m)
        var = w * var + (1 - w) * var_x + w * (1 - w) * (mean_x - mean) ** 2
        mean = w * mean + (1 - w) * mean_x
        n = n + m
    std = jnp.sqrt(var)
    if n > 0:
        x = (x - mean) / (std + EPS)
        x = jnp.clip(x, -CLIP, CLIP)
    return x, n, mean, var


if __name__ == "__main__":
    # Small config (matches the PyTorch module's typical RL observation use).
    dim = 32
    batch = 8
    key = jax.random.PRNGKey(0)
    k1, k2 = jax.random.split(key)
    x1 = jax.random.normal(k1, (batch, dim), jnp.float32) * 3.0 + 1.5
    x2 = jax.random.normal(k2, (batch, dim), jnp.float32) * 0.5 - 2.0

    mod = RunningNormPallas(dim)
    y1 = mod.forward(x1, training=True)     # n == 0 step (w = 0)
    y2 = mod.forward(x2, training=True)     # n > 0 stat merging
    y3 = mod.forward(x1, training=False)    # eval kernel
    jax.block_until_ready((y1, y2, y3, mod.mean, mod.var, mod.std))

    r1, n_r, mean_r, var_r = _reference_forward(
        x1, 0, jnp.zeros((1, dim), jnp.float32), jnp.ones((1, dim), jnp.float32))
    r2, n_r, mean_r, var_r = _reference_forward(x2, n_r, mean_r, var_r)
    r3, _, _, _ = _reference_forward(x1, n_r, mean_r, var_r, training=False)

    assert jnp.allclose(y1, r1, atol=1e-5, rtol=1e-5)
    assert jnp.allclose(y2, r2, atol=1e-5, rtol=1e-5)
    assert jnp.allclose(y3, r3, atol=1e-5, rtol=1e-5)
    assert jnp.allclose(mod.mean, mean_r, atol=1e-5, rtol=1e-5)
    assert jnp.allclose(mod.var, var_r, atol=1e-5, rtol=1e-5)

    # Larger config: exercises the MXU batch-reduction path (m >= 256) and an
    # already lane-dense dim (no padding). Looser tolerance because the MXU f32
    # reduction rounds slightly differently from the VPU reference.
    dim2, batch2 = 256, 512
    xk = jax.random.normal(jax.random.PRNGKey(1), (batch2, dim2), jnp.float32)
    mod2 = RunningNormPallas(dim2)
    yb = mod2.forward(xk, training=True)
    ye = mod2.forward(xk, training=False)
    jax.block_until_ready((yb, ye, mod2.mean, mod2.var))

    rb, n2, mean2, var2 = _reference_forward(
        xk, 0, jnp.zeros((1, dim2), jnp.float32), jnp.ones((1, dim2), jnp.float32))
    re_, _, _, _ = _reference_forward(xk, n2, mean2, var2, training=False)

    assert jnp.allclose(yb, rb, atol=2e-3, rtol=2e-3)
    assert jnp.allclose(ye, re_, atol=2e-3, rtol=2e-3)
    assert jnp.allclose(mod2.mean, mean2, atol=2e-3, rtol=2e-3)
    assert jnp.allclose(mod2.var, var2, atol=2e-3, rtol=2e-3)

    print("KERNEL_OK")
</pallas_src>

<mosaic_0001>
module attributes {stable_mosaic.version = 11 : i64} {
  func.func @_update_normalize_kernel(%arg0: i32, %arg1: memref<1xf32, #tpu.memory_space<smem>>, %arg2: memref<8x128xf32, #tpu.memory_space<vmem>>, %arg3: memref<1x128xf32, #tpu.memory_space<vmem>>, %arg4: memref<1x128xf32, #tpu.memory_space<vmem>>, %arg5: memref<8x128xf32, #tpu.memory_space<vmem>>, %arg6: memref<1x128xf32, #tpu.memory_space<vmem>>, %arg7: memref<1x128xf32, #tpu.memory_space<vmem>>, %arg8: memref<1x128xf32, #tpu.memory_space<vmem>>) attributes {dimension_semantics = [#tpu.dimension_semantics<parallel>], iteration_bounds = array<i64: 1>, scalar_prefetch = 0 : i64, scratch_operands = 0 : i64, tpu.core_type = #tpu.core_type<tc>, window_params = [{transform_indices = @transform_0, window_bounds = array<i64: 1>}, {transform_indices = @transform_1, window_bounds = array<i64: 8, 128>}, {transform_indices = @transform_2, window_bounds = array<i64: 1, 128>}, {transform_indices = @transform_3, window_bounds = array<i64: 1, 128>}, {transform_indices = @transform_4, window_bounds = array<i64: 8, 128>}, {transform_indices = @transform_5, window_bounds = array<i64: 1, 128>}, {transform_indices = @transform_6, window_bounds = array<i64: 1, 128>}, {transform_indices = @transform_7, window_bounds = array<i64: 1, 128>}]} {
    %c0 = arith.constant 0 : index
    %c0_0 = arith.constant 0 : index
    %0 = vector.load %arg2[%c0, %c0_0] : memref<8x128xf32, #tpu.memory_space<vmem>>, vector<8x128xf32>
    %cst = arith.constant dense<0.000000e+00> : vector<128xf32>
    %1 = vector.multi_reduction <add>, %0, %cst [0] : vector<8x128xf32> to vector<128xf32>
    %2 = vector.shape_cast %1 : vector<128xf32> to vector<1x128xf32>
    %cst_1 = arith.constant 8.000000e+00 : f32
    %3 = vector.broadcast %cst_1 : f32 to vector<1x128xf32>
    %4 = arith.divf %2, %3 : vector<1x128xf32>
    %5 = vector.broadcast %4 : vector<1x128xf32> to vector<8x128xf32>
    %6 = arith.subf %0, %5 : vector<8x128xf32>
    %7 = arith.mulf %6, %6 : vector<8x128xf32>
    %cst_2 = arith.constant dense<0.000000e+00> : vector<128xf32>
    %8 = vector.multi_reduction <add>, %7, %cst_2 [0] : vector<8x128xf32> to vector<128xf32>
    %9 = vector.shape_cast %8 : vector<128xf32> to vector<1x128xf32>
    %cst_3 = arith.constant 8.000000e+00 : f32
    %10 = vector.broadcast %cst_3 : f32 to vector<1x128xf32>
    %11 = arith.divf %9, %10 : vector<1x128xf32>
    %c0_4 = arith.constant 0 : index
    %12 = memref.load %arg1[%c0_4] : memref<1xf32, #tpu.memory_space<smem>>
    %c0_5 = arith.constant 0 : index
    %c0_6 = arith.constant 0 : index
    %13 = vector.load %arg3[%c0_5, %c0_6] : memref<1x128xf32, #tpu.memory_space<vmem>>, vector<1x128xf32>
    %c0_7 = arith.constant 0 : index
    %c0_8 = arith.constant 0 : index
    %14 = vector.load %arg4[%c0_7, %c0_8] : memref<1x128xf32, #tpu.memory_space<vmem>>, vector<1x128xf32>
    %15 = vector.broadcast %12 : f32 to vector<1x128xf32>
    %16 = arith.mulf %15, %14 : vector<1x128xf32>
    %cst_9 = arith.constant 1.000000e+00 : f32
    %17 = arith.subf %cst_9, %12 : f32
    %18 = vector.broadcast %17 : f32 to vector<1x128xf32>
    %19 = arith.mulf %18, %11 : vector<1x128xf32>
    %20 = arith.addf %16, %19 : vector<1x128xf32>
    %cst_10 = arith.constant 1.000000e+00 : f32
    %21 = arith.subf %cst_10, %12 : f32
    %22 = arith.mulf %12, %21 : f32
    %23 = arith.subf %4, %13 : vector<1x128xf32>
    %24 = arith.mulf %23, %23 : vector<1x128xf32>
    %25 = vector.broadcast %22 : f32 to vector<1x128xf32>
    %26 = arith.mulf %25, %24 : vector<1x128xf32>
    %27 = arith.addf %20, %26 : vector<1x128xf32>
    %28 = vector.broadcast %12 : f32 to vector<1x128xf32>
    %29 = arith.mulf %28, %13 : vector<1x128xf32>
    %cst_11 = arith.constant 1.000000e+00 : f32
    %30 = arith.subf %cst_11, %12 : f32
    %31 = vector.broadcast %30 : f32 to vector<1x128xf32>
    %32 = arith.mulf %31, %4 : vector<1x128xf32>
    %33 = arith.addf %29, %32 : vector<1x128xf32>
    %34 = math.sqrt %27 : vector<1x128xf32>
    %c0_12 = arith.constant 0 : index
    %c0_13 = arith.constant 0 : index
    %35 = vector.load %arg6[%c0_12, %c0_13] : memref<1x128xf32, #tpu.memory_space<vmem>>, vector<1x128xf32>
    tpu.vector_store %arg6[%c0_12, %c0_13], %33 {strides = array<i32>} : memref<1x128xf32, #tpu.memory_space<vmem>>, vector<1x128xf32>,
    %c0_14 = arith.constant 0 : index
    %c0_15 = arith.constant 0 : index
    %36 = vector.load %arg7[%c0_14, %c0_15] : memref<1x128xf32, #tpu.memory_space<vmem>>, vector<1x128xf32>
    tpu.vector_store %arg7[%c0_14, %c0_15], %27 {strides = array<i32>} : memref<1x128xf32, #tpu.memory_space<vmem>>, vector<1x128xf32>,
    %c0_16 = arith.constant 0 : index
    %c0_17 = arith.constant 0 : index
    %37 = vector.load %arg8[%c0_16, %c0_17] : memref<1x128xf32, #tpu.memory_space<vmem>>, vector<1x128xf32>
    tpu.vector_store %arg8[%c0_16, %c0_17], %34 {strides = array<i32>} : memref<1x128xf32, #tpu.memory_space<vmem>>, vector<1x128xf32>,
    %cst_18 = arith.constant 9.99999993E-9 : f32
    %38 = vector.broadcast %cst_18 : f32 to vector<1x128xf32>
    %39 = arith.addf %34, %38 : vector<1x128xf32>
    %cst_19 = arith.constant 1.000000e+00 : f32
    %40 = vector.broadcast %cst_19 : f32 to vector<1x128xf32>
    %41 = arith.divf %40, %39 : vector<1x128xf32>
    %42 = vector.broadcast %33 : vector<1x128xf32> to vector<8x128xf32>
    %43 = arith.subf %0, %42 : vector<8x128xf32>
    %44 = vector.broadcast %41 : vector<1x128xf32> to vector<8x128xf32>
    %45 = arith.mulf %43, %44 : vector<8x128xf32>
    %cst_20 = arith.constant -1.000000e+01 : f32
    %cst_21 = arith.constant 1.000000e+01 : f32
    %46 = vector.broadcast %cst_20 : f32 to vector<8x128xf32>
    %47 = arith.maximumf %46, %45 : vector<8x128xf32>
    %48 = vector.broadcast %cst_21 : f32 to vector<8x128xf32>
    %49 = arith.minimumf %48, %47 : vector<8x128xf32>
    %c0_22 = arith.constant 0 : index
    %c0_23 = arith.constant 0 : index
    %50 = vector.load %arg5[%c0_22, %c0_23] : memref<8x128xf32, #tpu.memory_space<vmem>>, vector<8x128xf32>
    tpu.vector_store %arg5[%c0_22, %c0_23], %49 {strides = array<i32>} : memref<8x128xf32, #tpu.memory_space<vmem>>, vector<8x128xf32>,
    return
  }
  func.func @transform_0(%arg0: i32) -> i32 {
    %c0_i32 = arith.constant 0 : i32
    %c0_i32_0 = arith.constant 0 : i32
    return %c0_i32 : i32
  }
  func.func @transform_1(%arg0: i32) -> (i32, i32) {
    %c0_i32 = arith.constant 0 : i32
    %c0_i32_0 = arith.constant 0 : i32
    return %c0_i32, %arg0 : i32, i32
  }
  func.func @transform_2(%arg0: i32) -> (i32, i32) {
    %c0_i32 = arith.constant 0 : i32
    %c0_i32_0 = arith.constant 0 : i32
    return %c0_i32, %arg0 : i32, i32
  }
  func.func @transform_3(%arg0: i32) -> (i32, i32) {
    %c0_i32 = arith.constant 0 : i32
    %c0_i32_0 = arith.constant 0 : i32
    return %c0_i32, %arg0 : i32, i32
  }
  func.func @transform_4(%arg0: i32) -> (i32, i32) {
    %c0_i32 = arith.constant 0 : i32
    %c0_i32_0 = arith.constant 0 : i32
    return %c0_i32, %arg0 : i32, i32
  }
  func.func @transform_5(%arg0: i32) -> (i32, i32) {
    %c0_i32 = arith.constant 0 : i32
    %c0_i32_0 = arith.constant 0 : i32
    return %c0_i32, %arg0 : i32, i32
  }
  func.func @transform_6(%arg0: i32) -> (i32, i32) {
    %c0_i32 = arith.constant 0 : i32
    %c0_i32_0 = arith.constant 0 : i32
    return %c0_i32, %arg0 : i32, i32
  }
  func.func @transform_7(%arg0: i32) -> (i32, i32) {
    %c0_i32 = arith.constant 0 : i32
    %c0_i32_0 = arith.constant 0 : i32
    return %c0_i32, %arg0 : i32, i32
  }
}

</mosaic_0001>

<llo_original>
// kernel: _forward_train_call.1
$region0: #{_forward_train_call.1}
  #allocation0 [shape = 'u32[]', space=smem, size = 0x4, offset = 0x4, fixed_abs, tag = 'smem constant byte address 0x4 - core index']
  #allocation1 [shape = 'u32[144,128]{1,0:T(1,128)}', space=vmem, size = 0x12000, scoped, tag = 'internal scratch']
  #allocation2 [shape = 'f32[1]{0:T(128)S(6)}', space=smem, size = 0x200, scoped, tag = 'scoped memory for _forward_train_call.1']
  %s0 = inlined_call_operand.<no memory space> [shape: f32[1], index: 0, kind: input, shape index: {}]
  %s1 = inlined_call_operand.hbm [shape: f32[8,128], index: 1, kind: input, shape index: {}]
  %s2 = inlined_call_operand.vmem [shape: f32[1,128], index: 2, kind: input, shape index: {}]
  %s3 = inlined_call_operand.vmem [shape: f32[1,128], index: 3, kind: input, shape index: {}]
  %s4 = inlined_call_operand.hbm [shape: f32[8,128], index: 4, kind: output, shape index: {0}]
  %s5 = inlined_call_operand.hbm [shape: f32[1,128], index: 5, kind: output, shape index: {1}]
  %s6 = inlined_call_operand.hbm [shape: f32[1,128], index: 6, kind: output, shape index: {2}]
  %s7 = inlined_call_operand.hbm [shape: f32[1,128], index: 7, kind: output, shape index: {3}]
  %8 = xla_tuple %s4, %s5, %s6, %s7
  %s9 = sld [smem:[#allocation0]]
  $region54: #{_forward_train_call.1} parent=0
    _
  %s11 = ssub.s32 1, %s9
  %s12 = scalar_select 0, %s11, %s9
  %13 = sst [smem:[#allocation2]] %s0
  $region1: #{_forward_train_call.1} parent=0
    #allocation3 [shape = 'u8[4096]{0}', space=vmem, size = 0x1000, scoped, tag = 'input window, operand 1, single buffered']
    #allocation4 [shape = 's32[1]{0}', space=sflag, size = 0x4, scoped, tag = 'scoped memory for _forward_train_call.1']
    #allocation5 [shape = 's32[1]{0}', space=sflag, size = 0x4, scoped, tag = 'scoped memory for _forward_train_call.1']
    #allocation6 [shape = 'u8[4096]{0}', space=vmem, size = 0x1000, scoped, tag = 'output window, operand 0, single buffered']
    #allocation7 [shape = 'u8[512]{0}', space=vmem, size = 0x400, scoped, tag = 'output window, operand 1, single buffered']
    #allocation8 [shape = 's32[1]{0}', space=sflag, size = 0x4, scoped, tag = 'scoped memory for _forward_train_call.1']
    #allocation9 [shape = 'u8[512]{0}', space=vmem, size = 0x400, scoped, tag = 'output window, operand 2, single buffered']
    #allocation10 [shape = 'u8[512]{0}', space=vmem, size = 0x400, scoped, tag = 'output window, operand 3, single buffered']
    #allocation11 [shape = 's32[1]{0}', space=sflag, size = 0x4, scoped, tag = 'scoped memory for _forward_train_call.1']
    %14 = vsyncpa [#allocation4], 0
    %15 = vsyncpa [#allocation5], 0
    %16 = vsyncpa [#allocation8], 0
    %17 = vsyncpa [#allocation11], 0
    // Predicated region
    $region2: #{_forward_train_call.1} parent=1 // pred_check
      _
    $region3: #{_forward_train_call.1} parent=1 // pred_check_branch
      %19 = sbr.rel (0) target = $region5
    $region4: #{_forward_train_call.1} parent=1 // pred_region
      _
    $region5: #{_forward_train_call.1} parent=1 // pred_fallthru
      _
    // Predicated region
    $region6: #{_forward_train_call.1} parent=1 // pred_check
      _
    $region7: #{_forward_train_call.1} parent=1 // pred_check_branch
      %21 = sbr.rel (0) target = $region9
    $region8: #{_forward_train_call.1} parent=1 // pred_region
      %s23 = ssub.s32 128, 128
      %24 = vsyncadd [#allocation4], %s23
      %s26 = sshll.u32 [#allocation3], 4
      %s27 = int_to_ptr.vmem [resolvable:$true] %s26
      %29 = dma.hbm_to_vmem [thread:$0]  %s1, 128, %s27, [#allocation4]
    $region9: #{_forward_train_call.1} parent=1 // pred_fallthru
      _
    // Predicated region
    $region10: #{_forward_train_call.1} parent=1 // pred_check
      _
    $region11: #{_forward_train_call.1} parent=1 // pred_check_branch
      %31 = sbr.rel (0) target = $region13
    $region12: #{_forward_train_call.1} parent=1 // pred_region
      _
    $region13: #{_forward_train_call.1} parent=1 // pred_fallthru
      _
    // Predicated region
    $region14: #{_forward_train_call.1} parent=1 // pred_check
      _
    $region15: #{_forward_train_call.1} parent=1 // pred_check_branch
      %33 = sbr.rel (0) target = $region17
    $region16: #{_forward_train_call.1} parent=1 // pred_region
      _
    $region17: #{_forward_train_call.1} parent=1 // pred_fallthru
      _
    // Predicated region
    $region18: #{_forward_train_call.1} parent=1 // pred_check
      _
    $region19: #{_forward_train_call.1} parent=1 // pred_check_branch
      %35 = sbr.rel (0) target = $region21
    $region20: #{_forward_train_call.1} parent=1 // pred_region
      %36 = dma.done [#allocation4], 128
    $region21: #{_forward_train_call.1} parent=1 // pred_fallthru
      _
    %v37 = vld [vmem:[#allocation3] sm:$0xff]
    %v38 = vrot.slane %v37, 4
    %v39 = vadd.f32 %v37, %v38
    %v40 = vrot.slane %v39, 2
    %v41 = vadd.f32 %v39, %v40
    %v42 = vrot.slane %v41, 1
    %v43 = vadd.f32 %v41, %v42
    %v44 = vrcp.pop 8.0
    %v45 = vmul.f32 %v43, %v44
    %v46 = vsub.f32 %v37, %v45
    %v47 = vmul.f32 %v46, %v46
    %v48 = vrot.slane %v47, 4
    %v49 = vadd.f32 %v47, %v48
    %v50 = vrot.slane %v49, 2
    %v51 = vadd.f32 %v49, %v50
    %v52 = vrot.slane %v51, 1
    %v53 = vadd.f32 %v51, %v52
    %v54 = vmul.f32 %v53, %v44
    %s55 = sld [smem:[#allocation2]]
    %v56 = vld [vmem:[%s2] sm:$0x1]
    %v57 = vld [vmem:[%s3] sm:$0x1]
    %v58 = vstv %s55
    %v59 = vmul.f32 %v58, %v57
    %s60 = ssub.f32 1.0, %s55
    %v61 = vstv %s60
    %v62 = vmul.f32 %v61, %v54
    %v63 = vadd.f32 %v59, %v62
    %s64 = smul.f32 %s55, %s60
    %v65 = vsub.f32 %v45, %v56
    %v66 = vmul.f32 %v65, %v65
    %v67 = vstv %s64
    %v68 = vmul.f32 %v67, %v66
    %v69 = vadd.f32 %v63, %v68
    %v70 = vmul.f32 %v58, %v56
    %v71 = vmul.f32 %v61, %v45
    %v72 = vadd.f32 %v70, %v71
    %v73 = vrsqrt.pop %v69
    %v74 = vmul.f32 %v69, %v73
    %vm75 = vcmp.eq.f32.partialorder %v69, inf
    %v76 = vsel %vm75, %v69, %v74
    %vm77 = vcmp.eq.f32.partialorder %v69, 0.0
    %v78 = vand.u32 %v69, 2147483648
    %v79 = vsel %vm77, %v78, %v76
    %80 = vst [vmem:[#allocation7] sm:$0x1] %v72
    %81 = vst [vmem:[#allocation9] sm:$0x1] %v69
    %82 = vst [vmem:[#allocation10] sm:$0x1] %v79
    %v83 = vadd.f32 %v79, 1e-08
    %v84 = vrcp.pop %v83
    %v85 = vmul.f32 1.0, %v84
    %v87 = vlaneseq
    %v88 = vshrl.u32 %v87, 7
    %v89 = vsub.s32 0, %v88
    %v90 = vrot.slane %v72, %v89
    %v92 = vsub.f32 %v37, %v90
    %v94 = vlaneseq
    %v95 = vshrl.u32 %v94, 7
    %v96 = vsub.s32 0, %v95
    %v97 = vrot.slane %v85, %v96
    %v99 = vmul.f32 %v92, %v97
    %v100 = vmax.f32 %v99, -10.0
    %v101 = vmin.f32 %v100, 10.0
    %102 = vst [vmem:[#allocation6] sm:$0xff] %v101
    // Predicated region
    $region22: #{_forward_train_call.1} parent=1 // pred_check
      _
    $region23: #{_forward_train_call.1} parent=1 // pred_check_branch
      %104 = sbr.rel (0) target = $region25
    $region24: #{_forward_train_call.1} parent=1 // pred_region
      %s106 = ssub.s32 128, 128
      %107 = vsyncadd [#allocation5], %s106
      %s109 = sshll.u32 [#allocation6], 4
      %s110 = int_to_ptr.vmem [resolvable:$true] %s109
      %112 = dma.vmem_to_hbm [thread:$0]  %s110, 128, %s4, [#allocation5]
    $region25: #{_forward_train_call.1} parent=1 // pred_fallthru
      _
    // Predicated region
    $region26: #{_forward_train_call.1} parent=1 // pred_check
      _
    $region27: #{_forward_train_call.1} parent=1 // pred_check_branch
      %114 = sbr.rel (0) target = $region29
    $region28: #{_forward_train_call.1} parent=1 // pred_region
      %s116 = ssub.s32 16, 16
      %117 = vsyncadd [#allocation8], %s116
      %s119 = sshll.u32 [#allocation7], 4
      %s120 = int_to_ptr.vmem [resolvable:$true] %s119
      %122 = dma.vmem_to_hbm [thread:$0]  %s120, 16, %s5, [#allocation8]
    $region29: #{_forward_train_call.1} parent=1 // pred_fallthru
      _
    // Predicated region
    $region30: #{_forward_train_call.1} parent=1 // pred_check
      _
    $region31: #{_forward_train_call.1} parent=1 // pred_check_branch
      %124 = sbr.rel (0) target = $region33
    $region32: #{_forward_train_call.1} parent=1 // pred_region
      %s126 = ssub.s32 16, 16
      %127 = vsyncadd [#allocation8], %s126
      %s129 = sshll.u32 [#allocation9], 4
      %s130 = int_to_ptr.vmem [resolvable:$true] %s129
      %132 = dma.vmem_to_hbm [thread:$0]  %s130, 16, %s6, [#allocation8]
    $region33: #{_forward_train_call.1} parent=1 // pred_fallthru
      _
    // Predicated region
    $region34: #{_forward_train_call.1} parent=1 // pred_check
      _
    $region35: #{_forward_train_call.1} parent=1 // pred_check_branch
      %134 = sbr.rel (0) target = $region37
    $region36: #{_forward_train_call.1} parent=1 // pred_region
      %s136 = ssub.s32 16, 16
      %137 = vsyncadd [#allocation11], %s136
      %s139 = sshll.u32 [#allocation10], 4
      %s140 = int_to_ptr.vmem [resolvable:$true] %s139
      %142 = dma.vmem_to_hbm [thread:$0]  %s140, 16, %s7, [#allocation11]
    $region37: #{_forward_train_call.1} parent=1 // pred_fallthru
      _
    // Predicated region
    $region38: #{_forward_train_call.1} parent=1 // pred_check
      _
    $region39: #{_forward_train_call.1} parent=1 // pred_check_branch
      %144 = sbr.rel (0) target = $region41
    $region40: #{_forward_train_call.1} parent=1 // pred_region
      %145 = dma.done [#allocation5], 128
    $region41: #{_forward_train_call.1} parent=1 // pred_fallthru
      _
    // Predicated region
    $region42: #{_forward_train_call.1} parent=1 // pred_check
      _
    $region43: #{_forward_train_call.1} parent=1 // pred_check_branch
      %147 = sbr.rel (0) target = $region45
    $region44: #{_forward_train_call.1} parent=1 // pred_region
      %148 = dma.done [#allocation8], 16
    $region45: #{_forward_train_call.1} parent=1 // pred_fallthru
      _
    // Predicated region
    $region46: #{_forward_train_call.1} parent=1 // pred_check
      _
    $region47: #{_forward_train_call.1} parent=1 // pred_check_branch
      %150 = sbr.rel (0) target = $region49
    $region48: #{_forward_train_call.1} parent=1 // pred_region
      %151 = dma.done [#allocation8], 16
    $region49: #{_forward_train_call.1} parent=1 // pred_fallthru
      _
    // Predicated region
    $region50: #{_forward_train_call.1} parent=1 // pred_check
      _
    $region51: #{_forward_train_call.1} parent=1 // pred_check_branch
      %153 = sbr.rel (0) target = $region53
    $region52: #{_forward_train_call.1} parent=1 // pred_region
      %154 = dma.done [#allocation11], 16
    $region53: #{_forward_train_call.1} parent=1 // pred_fallthru
      _
    %155 = vsyncpa [#allocation4], 1
    %156 = vsyncpa [#allocation5], 1
    %157 = vsyncpa [#allocation8], 1
    %158 = vsyncpa [#allocation11], 1

</llo_original>
